<compile_context>
chip_gen: v7x
topology: tpu7x:2x2x1
jax: 0.10.0
libtpu: 0.0.40
codegen_flags: <defaults>
</compile_context>

<pallas_src>
import functools
import math

import jax
import jax.numpy as jnp
from jax.experimental import pallas as pl
from jax.experimental.pallas import tpu as pltpu

LANE = 128          # packed K/N width (one MXU tile of lanes)
TILE_B_MAX = 512    # above this batch, switch to a batch-parallel grid


def actor_mlp_kernel(x_ref, w_ref, out_ref, *, n_actions):
    """x_ref: (TB, LANE) bias-augmented input (col `in_size` == 1),
    w_ref: (3, LANE, LANE) packed weights with folded bias rows,
    out_ref: (TB, n_actions) log-probabilities."""
    x = x_ref[...]

    # Layer 1 + ReLU.  Bias folded: the 1 in x's bias column multiplies the
    # bias row of w_ref[0]; that row also writes a 1 into the next bias lane.
    h = jnp.maximum(jnp.dot(x, w_ref[0], preferred_element_type=jnp.float32), 0.0)

    # Layer 2 + ReLU (same bias-folding trick, 1 carried forward through ReLU).
    h = jnp.maximum(jnp.dot(h, w_ref[1], preferred_element_type=jnp.float32), 0.0)

    # Output layer; only the first n_actions lanes are meaningful.
    logits = jnp.dot(h, w_ref[2], preferred_element_type=jnp.float32)[:, :n_actions]

    # Row-wise log_softmax (numerically stable), matches F.log_softmax(dim=1).
    m = jnp.max(logits, axis=-1, keepdims=True)
    shifted = logits - m
    lse = jnp.log(jnp.sum(jnp.exp(shifted), axis=-1, keepdims=True))
    out_ref[...] = shifted - lse


@functools.partial(jax.jit, static_argnames=("n_actions",))
def actor_forward(s, z, packed_w, *, n_actions):
    """s: (B, obs_dim) f32, z: (B, z_dim) f32 -> log-probs (B, n_actions)."""
    s = s.astype(jnp.float32)
    z = z.astype(jnp.float32)
    x = jnp.concatenate([s, z], axis=1)            # (B, in_size), fused by jit
    b, in_size = x.shape
    assert in_size < LANE

    # Bias-augmented, lane-padded input: [x, 1, 0, ..., 0]  -> (B, LANE).
    x_aug = jnp.zeros((b, LANE), jnp.float32)
    x_aug = x_aug.at[:, :in_size].set(x).at[:, in_size].set(1.0)

    n_layers = packed_w.shape[0]
    cost = pl.CostEstimate(
        flops=2 * b * n_layers * LANE * LANE,              # padded MXU work
        transcendentals=b * (n_actions + 1),               # exp + log
        bytes_accessed=4 * (x_aug.size + packed_w.size + b * n_actions))

    kernel = functools.partial(actor_mlp_kernel, n_actions=n_actions)
    vmem = pl.BlockSpec(memory_space=pltpu.MemorySpace.VMEM)

    if b <= TILE_B_MAX:
        # Single-block path: exactly 2 input DMAs (x_aug + packed weights).
        return pl.pallas_call(
            kernel,
            out_shape=jax.ShapeDtypeStruct((b, n_actions), jnp.float32),
            in_specs=[vmem, vmem],
            out_specs=vmem,
            cost_estimate=cost,
        )(x_aug, packed_w)

    # Large-batch path: batch-parallel grid; weights stay VMEM-resident
    # (index_map returns the same block every step).
    # TODO(synk): bf16 MXU operands here on v6e/v7x (f32 accumulate/elementwise).
    tile_b = TILE_B_MAX
    bp = pl.cdiv(b, tile_b) * tile_b
    x_pad = jnp.zeros((bp, LANE), jnp.float32).at[:b].set(x_aug)
    out = pl.pallas_call(
        kernel,
        out_shape=jax.ShapeDtypeStruct((bp, n_actions), jnp.float32),
        grid=(bp // tile_b,),
        in_specs=[pl.BlockSpec((tile_b, LANE), lambda i: (i, 0)),
                  pl.BlockSpec((n_layers, LANE, LANE), lambda i: (0, 0, 0))],
        out_specs=pl.BlockSpec((tile_b, n_actions), lambda i: (i, 0)),
        compiler_params=pltpu.CompilerParams(dimension_semantics=("parallel",)),
        cost_estimate=cost,
    )(x_pad, packed_w)
    return out[:b]


def init_params(key, in_size, hidden_sizes, out_size):
    """Deterministic init mimicking torch.nn.Linear defaults.

    Weights are stored transposed: shape (fan_in, fan_out); bias (fan_out,).
    """
    sizes = [in_size] + list(hidden_sizes) + [out_size]
    params = []
    for fan_in, fan_out in zip(sizes[:-1], sizes[1:]):
        key, kw, kb = jax.random.split(key, 3)
        bound = 1.0 / math.sqrt(fan_in)
        w = jax.random.uniform(kw, (fan_in, fan_out), jnp.float32, -bound, bound)
        b = jax.random.uniform(kb, (fan_out,), jnp.float32, -bound, bound)
        params.append((w, b))
    return params


def pack_params(params):
    """Pack all layers into a single (L, LANE, LANE) buffer, biases folded.

    Layout per layer l with weight (fan_in, fan_out) and bias (fan_out,):
      packed[l, :fan_in, :fan_out] = W
      packed[l, fan_in,  :fan_out] = b            (bias row, hit by the 1-lane)
      packed[l, fan_in,  fan_out]  = 1.0          (re-emit the 1 for layer l+1)
    Done once at init, not per call.
    """
    n_layers = len(params)
    packed = jnp.zeros((n_layers, LANE, LANE), jnp.float32)
    for l, (w, b) in enumerate(params):
        fan_in, fan_out = w.shape
        assert fan_in < LANE and fan_out < LANE
        packed = packed.at[l, :fan_in, :fan_out].set(w)
        packed = packed.at[l, fan_in, :fan_out].set(b)
        if l + 1 < n_layers:
            packed = packed.at[l, fan_in, fan_out].set(1.0)
    return packed


if __name__ == "__main__":
    # Small shapes consistent with the module:
    #   obs_dim = 12, prior (skill) dim = 4 -> in_size = 16
    #   hidden_sizes = (32, 32), n_actions = 8, batch = 2
    obs_dim, z_dim, hidden_sizes, n_actions, batch = 12, 4, (32, 32), 8, 2

    key = jax.random.PRNGKey(0)
    k_s, k_z, k_p = jax.random.split(key, 3)
    s = jax.random.normal(k_s, (batch, obs_dim), jnp.float32)
    z = jax.random.normal(k_z, (batch, z_dim), jnp.float32)

    params = init_params(k_p, obs_dim + z_dim, hidden_sizes, n_actions)
    packed_w = pack_params(params)

    log_probs = actor_forward(s, z, packed_w, n_actions=n_actions)
    jax.block_until_ready(log_probs)

    # Reference check against plain-JAX forward (same math, unpacked weights).
    (w1, b1), (w2, b2), (w3, b3) = params
    x = jnp.concatenate([s, z], axis=1)
    r = jnp.maximum(x @ w1 + b1, 0.0)
    r = jnp.maximum(r @ w2 + b2, 0.0)
    logits = r @ w3 + b3
    ref = jax.nn.log_softmax(logits, axis=1)

    assert log_probs.shape == (batch, n_actions)
    assert jnp.allclose(jnp.sum(jnp.exp(log_probs), axis=1), 1.0, atol=1e-5)
    assert jnp.allclose(log_probs, ref, atol=1e-5, rtol=1e-5)

    print("KERNEL_OK")
</pallas_src>

<mosaic_0001>
module attributes {stable_mosaic.version = 11 : i64} {
  func.func @actor_mlp_kernel(%arg0: memref<2x128xf32, #tpu.memory_space<vmem>>, %arg1: memref<3x128x128xf32, #tpu.memory_space<vmem>>, %arg2: memref<2x8xf32, #tpu.memory_space<vmem>>) attributes {dimension_semantics = [], scalar_prefetch = 0 : i64, scratch_operands = 0 : i64, tpu.core_type = #tpu.core_type<tc>} {
    %c0 = arith.constant 0 : index
    %c0_0 = arith.constant 0 : index
    %0 = vector.load %arg0[%c0, %c0_0] : memref<2x128xf32, #tpu.memory_space<vmem>>, vector<2x128xf32>
    %c0_1 = arith.constant 0 : index
    %c0_2 = arith.constant 0 : index
    %c0_3 = arith.constant 0 : index
    %1 = vector.load %arg1[%c0_1, %c0_2, %c0_3] : memref<3x128x128xf32, #tpu.memory_space<vmem>>, vector<1x128x128xf32>
    %2 = vector.shape_cast %1 : vector<1x128x128xf32> to vector<128x128xf32>
    %cst = arith.constant dense<0.000000e+00> : vector<2x128xf32>
    %3 = tpu.matmul %0, %2, %cst {dimension_numbers = #tpu.dot_dimension_numbers<[1], [0], [0], [1], [0, 0, 1, 1], [], []>} : vector<2x128xf32>, vector<128x128xf32>, vector<2x128xf32> -> vector<2x128xf32>
    %cst_4 = arith.constant 0.000000e+00 : f32
    %4 = vector.broadcast %cst_4 : f32 to vector<2x128xf32>
    %5 = arith.maximumf %3, %4 : vector<2x128xf32>
    %c1 = arith.constant 1 : index
    %c0_5 = arith.constant 0 : index
    %c0_6 = arith.constant 0 : index
    %6 = vector.load %arg1[%c1, %c0_5, %c0_6] : memref<3x128x128xf32, #tpu.memory_space<vmem>>, vector<1x128x128xf32>
    %7 = vector.shape_cast %6 : vector<1x128x128xf32> to vector<128x128xf32>
    %cst_7 = arith.constant dense<0.000000e+00> : vector<2x128xf32>
    %8 = tpu.matmul %5, %7, %cst_7 {dimension_numbers = #tpu.dot_dimension_numbers<[1], [0], [0], [1], [0, 0, 1, 1], [], []>} : vector<2x128xf32>, vector<128x128xf32>, vector<2x128xf32> -> vector<2x128xf32>
    %cst_8 = arith.constant 0.000000e+00 : f32
    %9 = vector.broadcast %cst_8 : f32 to vector<2x128xf32>
    %10 = arith.maximumf %8, %9 : vector<2x128xf32>
    %c2 = arith.constant 2 : index
    %c0_9 = arith.constant 0 : index
    %c0_10 = arith.constant 0 : index
    %11 = vector.load %arg1[%c2, %c0_9, %c0_10] : memref<3x128x128xf32, #tpu.memory_space<vmem>>, vector<1x128x128xf32>
    %12 = vector.shape_cast %11 : vector<1x128x128xf32> to vector<128x128xf32>
    %cst_11 = arith.constant dense<0.000000e+00> : vector<2x128xf32>
    %13 = tpu.matmul %10, %12, %cst_11 {dimension_numbers = #tpu.dot_dimension_numbers<[1], [0], [0], [1], [0, 0, 1, 1], [], []>} : vector<2x128xf32>, vector<128x128xf32>, vector<2x128xf32> -> vector<2x128xf32>
    %14 = vector.extract_strided_slice %13 {offsets = [0, 0], sizes = [2, 8], strides = [1, 1]} : vector<2x128xf32> to vector<2x8xf32>
    %cst_12 = arith.constant dense<0xFF800000> : vector<2xf32>
    %15 = vector.multi_reduction <maximumf>, %14, %cst_12 [1] : vector<2x8xf32> to vector<2xf32>
    %16 = vector.shape_cast %15 : vector<2xf32> to vector<2x1xf32>
    %17 = vector.broadcast %16 : vector<2x1xf32> to vector<2x8xf32>
    %18 = arith.subf %14, %17 : vector<2x8xf32>
    %19 = math.exp %18 : vector<2x8xf32>
    %cst_13 = arith.constant dense<0.000000e+00> : vector<2xf32>
    %20 = vector.multi_reduction <add>, %19, %cst_13 [1] : vector<2x8xf32> to vector<2xf32>
    %21 = vector.shape_cast %20 : vector<2xf32> to vector<2x1xf32>
    %22 = math.log %21 : vector<2x1xf32>
    %23 = vector.broadcast %22 : vector<2x1xf32> to vector<2x8xf32>
    %24 = arith.subf %18, %23 : vector<2x8xf32>
    %c0_14 = arith.constant 0 : index
    %c0_15 = arith.constant 0 : index
    %25 = vector.load %arg2[%c0_14, %c0_15] : memref<2x8xf32, #tpu.memory_space<vmem>>, vector<2x8xf32>
    tpu.vector_store %arg2[%c0_14, %c0_15], %24 {strides = array<i32>} : memref<2x8xf32, #tpu.memory_space<vmem>>, vector<2x8xf32>,
    return
  }
}

</mosaic_0001>

<llo_original>
// kernel: actor_forward.1
$region0: #{actor_forward.1}
  #allocation0 [shape = 'u32[]', space=smem, size = 0x4, offset = 0x4, fixed_abs, tag = 'smem constant byte address 0x4 - core index']
  #allocation1 [shape = 'u32[144,128]{1,0:T(1,128)}', space=vmem, size = 0x12000, scoped, tag = 'internal scratch']
  %s0 = inlined_call_operand.vmem [shape: f32[2,128], index: 0, kind: input, shape index: {}]
  %s1 = inlined_call_operand.hbm [shape: f32[3,128,128], index: 1, kind: input, shape index: {}]
  %s2 = inlined_call_operand.hbm [shape: f32[2,8], index: 2, kind: output, shape index: {}]
  %s3 = sld [smem:[#allocation0]]
  $region22: #{actor_forward.1} parent=0
    _
  %s5 = ssub.s32 1, %s3
  %s6 = scalar_select 0, %s5, %s3
  $region1: #{actor_forward.1} parent=0
    #allocation2 [shape = 'u8[196608]{0}', space=vmem, size = 0x30000, scoped, tag = 'input window, operand 1, single buffered']
    #allocation3 [shape = 's32[1]{0}', space=sflag, size = 0x4, scoped, tag = 'scoped memory for actor_forward.1']
    #allocation4 [shape = 's32[1]{0}', space=sflag, size = 0x4, scoped, tag = 'scoped memory for actor_forward.1']
    #allocation5 [shape = 'u8[1024]{0}', space=vmem, size = 0x400, scoped, tag = 'output window, operand 0, single buffered']
    %7 = vsyncpa [#allocation3], 0
    %8 = vsyncpa [#allocation4], 0
    // Predicated region
    $region2: #{actor_forward.1} parent=1 // pred_check
      _
    $region3: #{actor_forward.1} parent=1 // pred_check_branch
      %10 = sbr.rel (0) target = $region5
    $region4: #{actor_forward.1} parent=1 // pred_region
      _
    $region5: #{actor_forward.1} parent=1 // pred_fallthru
      _
    // Predicated region
    $region6: #{actor_forward.1} parent=1 // pred_check
      _
    $region7: #{actor_forward.1} parent=1 // pred_check_branch
      %12 = sbr.rel (0) target = $region9
    $region8: #{actor_forward.1} parent=1 // pred_region
      %s14 = ssub.s32 6144, 6144
      %15 = vsyncadd [#allocation3], %s14
      %s16 = sshll.u32 [#allocation2], 4
      %s17 = int_to_ptr.vmem [resolvable:$true] %s16
      %22 = dma.hbm_to_vmem [thread:$0]  %s1, 6144, %s17, [#allocation3], 128, 128, 8
    $region9: #{actor_forward.1} parent=1 // pred_fallthru
      _
    // Predicated region
    $region10: #{actor_forward.1} parent=1 // pred_check
      _
    $region11: #{actor_forward.1} parent=1 // pred_check_branch
      %24 = sbr.rel (0) target = $region13
    $region12: #{actor_forward.1} parent=1 // pred_region
      %25 = dma.done [#allocation3], 6144
    $region13: #{actor_forward.1} parent=1 // pred_fallthru
      _
    %v26 = vld [vmem:[%s0] sm:$0x3]
    %v27 = vld [vmem:[#allocation2] sm:$0xff]
    %v28 = vld [vmem:[#allocation2 + $0x8] sm:$0xff]
    %v29 = vld [vmem:[#allocation2 + $0x10] sm:$0xff]
    %v30 = vld [vmem:[#allocation2 + $0x18] sm:$0xff]
    %v31 = vld [vmem:[#allocation2 + $0x20] sm:$0xff]
    %v32 = vld [vmem:[#allocation2 + $0x28] sm:$0xff]
    %v33 = vld [vmem:[#allocation2 + $0x30] sm:$0xff]
    %v34 = vld [vmem:[#allocation2 + $0x38] sm:$0xff]
    %v35 = vld [vmem:[#allocation2 + $0x40] sm:$0xff]
    %v36 = vld [vmem:[#allocation2 + $0x48] sm:$0xff]
    %v37 = vld [vmem:[#allocation2 + $0x50] sm:$0xff]
    %v38 = vld [vmem:[#allocation2 + $0x58] sm:$0xff]
    %v39 = vld [vmem:[#allocation2 + $0x60] sm:$0xff]
    %v40 = vld [vmem:[#allocation2 + $0x68] sm:$0xff]
    %v41 = vld [vmem:[#allocation2 + $0x70] sm:$0xff]
    %v42 = vld [vmem:[#allocation2 + $0x78] sm:$0xff]
    %43 = vmatprep.subr.mxu0 0.0
    %44 = vmatpush1.msra.mxu0 %v27
    %45 = vmatprep.subr.mxu0 0.0
    %46 = vmatpush1.msra.mxu0 %v28
    %47 = vmatprep.subr.mxu0 0.0
    %48 = vmatpush1.msra.mxu0 %v29
    %49 = vmatprep.subr.mxu0 0.0
    %50 = vmatpush1.msra.mxu0 %v30
    %51 = vmatprep.subr.mxu0 0.0
    %52 = vmatpush1.msra.mxu0 %v31
    %53 = vmatprep.subr.mxu0 0.0
    %54 = vmatpush1.msra.mxu0 %v32
    %55 = vmatprep.subr.mxu0 0.0
    %56 = vmatpush1.msra.mxu0 %v33
    %57 = vmatprep.subr.mxu0 0.0
    %58 = vmatpush1.msra.mxu0 %v34
    %59 = vmatprep.subr.mxu0 0.0
    %60 = vmatpush1.msra.mxu0 %v35
    %61 = vmatprep.subr.mxu0 0.0
    %62 = vmatpush1.msra.mxu0 %v36
    %63 = vmatprep.subr.mxu0 0.0
    %64 = vmatpush1.msra.mxu0 %v37
    %65 = vmatprep.subr.mxu0 0.0
    %66 = vmatpush1.msra.mxu0 %v38
    %67 = vmatprep.subr.mxu0 0.0
    %68 = vmatpush1.msra.mxu0 %v39
    %69 = vmatprep.subr.mxu0 0.0
    %70 = vmatpush1.msra.mxu0 %v40
    %71 = vmatprep.subr.mxu0 0.0
    %72 = vmatpush1.msra.mxu0 %v41
    %73 = vmatprep.subr.mxu0 0.0
    %74 = vmatpush1.msra.mxu0 %v42
    %75 = vmatprep.subr.mxu0 0.0
    %76 = vmatpush1.msra.mxu0 0.0
    %77 = vmatprep.subr.mxu0 0.0
    %78 = vmatpush1.msra.mxu0 0.0
    %79 = vmatprep.subr.mxu0 0.0
    %80 = vmatpush1.msra.mxu0 0.0
    %81 = vmatprep.subr.mxu0 0.0
    %82 = vmatpush1.msra.mxu0 0.0
    %83 = vmatprep.subr.mxu0 0.0
    %84 = vmatpush1.msra.mxu0 0.0
    %85 = vmatprep.subr.mxu0 0.0
    %86 = vmatpush1.msra.mxu0 0.0
    %87 = vmatprep.subr.mxu0 0.0
    %88 = vmatpush1.msra.mxu0 0.0
    %89 = vmatprep.subr.mxu0 0.0
    %90 = vmatpush1.msra.mxu0 0.0
    %91 = vmatprep.subr.mxu0 0.0
    %92 = vmatpush1.msra.mxu0 0.0
    %93 = vmatprep.subr.mxu0 0.0
    %94 = vmatpush1.msra.mxu0 0.0
    %95 = vmatprep.subr.mxu0 0.0
    %96 = vmatpush1.msra.mxu0 0.0
    %97 = vmatprep.subr.mxu0 0.0
    %98 = vmatpush1.msra.mxu0 0.0
    %99 = vmatprep.subr.mxu0 0.0
    %100 = vmatpush1.msra.mxu0 0.0
    %101 = vmatprep.subr.mxu0 0.0
    %102 = vmatpush1.msra.mxu0 0.0
    %103 = vmatprep.subr.mxu0 0.0
    %104 = vmatpush1.msra.mxu0 0.0
    %105 = vmatprep.subr.mxu0 0.0
    %106 = vmatpush1.msra.mxu0 0.0
    %107 = vmatprep.mubr.f32.mxu0 0.0
    %108 = vmatmul.mubr.f32.gmra.mrb[0].mxu0 %v26
    %v109 = vpop.f32.mrb[0].mxu0
    %v110 = vadd.f32 0.0, %v109
    %v111 = vpop.f32.mrb[0].mxu0
    %112 = vdwg.mxu0
    %v113 = vmax.f32 %v110, 0.0
    %s114 = scalar_lea.vmem [#allocation2], 128
    %v115 = vld [vmem:[%s114] sm:$0xff]
    %v116 = vld [vmem:[%s114 + $0x8] sm:$0xff]
    %v117 = vld [vmem:[%s114 + $0x10] sm:$0xff]
    %v118 = vld [vmem:[%s114 + $0x18] sm:$0xff]
    %v119 = vld [vmem:[%s114 + $0x20] sm:$0xff]
    %v120 = vld [vmem:[%s114 + $0x28] sm:$0xff]
    %v121 = vld [vmem:[%s114 + $0x30] sm:$0xff]
    %v122 = vld [vmem:[%s114 + $0x38] sm:$0xff]
    %v123 = vld [vmem:[%s114 + $0x40] sm:$0xff]
    %v124 = vld [vmem:[%s114 + $0x48] sm:$0xff]
    %v125 = vld [vmem:[%s114 + $0x50] sm:$0xff]
    %v126 = vld [vmem:[%s114 + $0x58] sm:$0xff]
    %v127 = vld [vmem:[%s114 + $0x60] sm:$0xff]
    %v128 = vld [vmem:[%s114 + $0x68] sm:$0xff]
    %v129 = vld [vmem:[%s114 + $0x70] sm:$0xff]
    %v130 = vld [vmem:[%s114 + $0x78] sm:$0xff]
    %131 = vmatprep.subr.mxu0 0.0
    %132 = vmatpush1.msra.mxu0 %v115
    %133 = vmatprep.subr.mxu0 0.0
    %134 = vmatpush1.msra.mxu0 %v116
    %135 = vmatprep.subr.mxu0 0.0
    %136 = vmatpush1.msra.mxu0 %v117
    %137 = vmatprep.subr.mxu0 0.0
    %138 = vmatpush1.msra.mxu0 %v118
    %139 = vmatprep.subr.mxu0 0.0
    %140 = vmatpush1.msra.mxu0 %v119
    %141 = vmatprep.subr.mxu0 0.0
    %142 = vmatpush1.msra.mxu0 %v120
    %143 = vmatprep.subr.mxu0 0.0
    %144 = vmatpush1.msra.mxu0 %v121
    %145 = vmatprep.subr.mxu0 0.0
    %146 = vmatpush1.msra.mxu0 %v122
    %147 = vmatprep.subr.mxu0 0.0
    %148 = vmatpush1.msra.mxu0 %v123
    %149 = vmatprep.subr.mxu0 0.0
    %150 = vmatpush1.msra.mxu0 %v124
    %151 = vmatprep.subr.mxu0 0.0
    %152 = vmatpush1.msra.mxu0 %v125
    %153 = vmatprep.subr.mxu0 0.0
    %154 = vmatpush1.msra.mxu0 %v126
    %155 = vmatprep.subr.mxu0 0.0
    %156 = vmatpush1.msra.mxu0 %v127
    %157 = vmatprep.subr.mxu0 0.0
    %158 = vmatpush1.msra.mxu0 %v128
    %159 = vmatprep.subr.mxu0 0.0
    %160 = vmatpush1.msra.mxu0 %v129
    %161 = vmatprep.subr.mxu0 0.0
    %162 = vmatpush1.msra.mxu0 %v130
    %163 = vmatprep.subr.mxu0 0.0
    %164 = vmatpush1.msra.mxu0 0.0
    %165 = vmatprep.subr.mxu0 0.0
    %166 = vmatpush1.msra.mxu0 0.0
    %167 = vmatprep.subr.mxu0 0.0
    %168 = vmatpush1.msra.mxu0 0.0
    %169 = vmatprep.subr.mxu0 0.0
    %170 = vmatpush1.msra.mxu0 0.0
    %171 = vmatprep.subr.mxu0 0.0
    %172 = vmatpush1.msra.mxu0 0.0
    %173 = vmatprep.subr.mxu0 0.0
    %174 = vmatpush1.msra.mxu0 0.0
    %175 = vmatprep.subr.mxu0 0.0
    %176 = vmatpush1.msra.mxu0 0.0
    %177 = vmatprep.subr.mxu0 0.0
    %178 = vmatpush1.msra.mxu0 0.0
    %179 = vmatprep.subr.mxu0 0.0
    %180 = vmatpush1.msra.mxu0 0.0
    %181 = vmatprep.subr.mxu0 0.0
    %182 = vmatpush1.msra.mxu0 0.0
    %183 = vmatprep.subr.mxu0 0.0
    %184 = vmatpush1.msra.mxu0 0.0
    %185 = vmatprep.subr.mxu0 0.0
    %186 = vmatpush1.msra.mxu0 0.0
    %187 = vmatprep.subr.mxu0 0.0
    %188 = vmatpush1.msra.mxu0 0.0
    %189 = vmatprep.subr.mxu0 0.0
    %190 = vmatpush1.msra.mxu0 0.0
    %191 = vmatprep.subr.mxu0 0.0
    %192 = vmatpush1.msra.mxu0 0.0
    %193 = vmatprep.subr.mxu0 0.0
    %194 = vmatpush1.msra.mxu0 0.0
    %195 = vmatprep.mubr.f32.mxu0 0.0
    %196 = vmatmul.mubr.f32.gmra.mrb[0].mxu0 %v113
    %v197 = vpop.f32.mrb[0].mxu0
    %v198 = vadd.f32 0.0, %v197
    %v199 = vpop.f32.mrb[0].mxu0
    %200 = vdwg.mxu0
    %v201 = vmax.f32 %v198, 0.0
    %s202 = scalar_lea.vmem [#allocation2], 256
    %v203 = vld [vmem:[%s202] sm:$0xff]
    %v204 = vld [vmem:[%s202 + $0x8] sm:$0xff]
    %v205 = vld [vmem:[%s202 + $0x10] sm:$0xff]
    %v206 = vld [vmem:[%s202 + $0x18] sm:$0xff]
    %v207 = vld [vmem:[%s202 + $0x20] sm:$0xff]
    %v208 = vld [vmem:[%s202 + $0x28] sm:$0xff]
    %v209 = vld [vmem:[%s202 + $0x30] sm:$0xff]
    %v210 = vld [vmem:[%s202 + $0x38] sm:$0xff]
    %v211 = vld [vmem:[%s202 + $0x40] sm:$0xff]
    %v212 = vld [vmem:[%s202 + $0x48] sm:$0xff]
    %v213 = vld [vmem:[%s202 + $0x50] sm:$0xff]
    %v214 = vld [vmem:[%s202 + $0x58] sm:$0xff]
    %v215 = vld [vmem:[%s202 + $0x60] sm:$0xff]
    %v216 = vld [vmem:[%s202 + $0x68] sm:$0xff]
    %v217 = vld [vmem:[%s202 + $0x70] sm:$0xff]
    %v218 = vld [vmem:[%s202 + $0x78] sm:$0xff]
    %219 = vmatprep.subr.mxu0 0.0
    %220 = vmatpush1.msra.mxu0 %v203
    %221 = vmatprep.subr.mxu0 0.0
    %222 = vmatpush1.msra.mxu0 %v204
    %223 = vmatprep.subr.mxu0 0.0
    %224 = vmatpush1.msra.mxu0 %v205
    %225 = vmatprep.subr.mxu0 0.0
    %226 = vmatpush1.msra.mxu0 %v206
    %227 = vmatprep.subr.mxu0 0.0
    %228 = vmatpush1.msra.mxu0 %v207
    %229 = vmatprep.subr.mxu0 0.0
    %230 = vmatpush1.msra.mxu0 %v208
    %231 = vmatprep.subr.mxu0 0.0
    %232 = vmatpush1.msra.mxu0 %v209
    %233 = vmatprep.subr.mxu0 0.0
    %234 = vmatpush1.msra.mxu0 %v210
    %235 = vmatprep.subr.mxu0 0.0
    %236 = vmatpush1.msra.mxu0 %v211
    %237 = vmatprep.subr.mxu0 0.0
    %238 = vmatpush1.msra.mxu0 %v212
    %239 = vmatprep.subr.mxu0 0.0
    %240 = vmatpush1.msra.mxu0 %v213
    %241 = vmatprep.subr.mxu0 0.0
    %242 = vmatpush1.msra.mxu0 %v214
    %243 = vmatprep.subr.mxu0 0.0
    %244 = vmatpush1.msra.mxu0 %v215
    %245 = vmatprep.subr.mxu0 0.0
    %246 = vmatpush1.msra.mxu0 %v216
    %247 = vmatprep.subr.mxu0 0.0
    %248 = vmatpush1.msra.mxu0 %v217
    %249 = vmatprep.subr.mxu0 0.0
    %250 = vmatpush1.msra.mxu0 %v218
    %251 = vmatprep.subr.mxu0 0.0
    %252 = vmatpush1.msra.mxu0 0.0
    %253 = vmatprep.subr.mxu0 0.0
    %254 = vmatpush1.msra.mxu0 0.0
    %255 = vmatprep.subr.mxu0 0.0
    %256 = vmatpush1.msra.mxu0 0.0
    %257 = vmatprep.subr.mxu0 0.0
    %258 = vmatpush1.msra.mxu0 0.0
    %259 = vmatprep.subr.mxu0 0.0
    %260 = vmatpush1.msra.mxu0 0.0
    %261 = vmatprep.subr.mxu0 0.0
    %262 = vmatpush1.msra.mxu0 0.0
    %263 = vmatprep.subr.mxu0 0.0
    %264 = vmatpush1.msra.mxu0 0.0
    %265 = vmatprep.subr.mxu0 0.0
    %266 = vmatpush1.msra.mxu0 0.0
    %267 = vmatprep.subr.mxu0 0.0
    %268 = vmatpush1.msra.mxu0 0.0
    %269 = vmatprep.subr.mxu0 0.0
    %270 = vmatpush1.msra.mxu0 0.0
    %271 = vmatprep.subr.mxu0 0.0
    %272 = vmatpush1.msra.mxu0 0.0
    %273 = vmatprep.subr.mxu0 0.0
    %274 = vmatpush1.msra.mxu0 0.0
    %275 = vmatprep.subr.mxu0 0.0
    %276 = vmatpush1.msra.mxu0 0.0
    %277 = vmatprep.subr.mxu0 0.0
    %278 = vmatpush1.msra.mxu0 0.0
    %279 = vmatprep.subr.mxu0 0.0
    %280 = vmatpush1.msra.mxu0 0.0
    %281 = vmatprep.subr.mxu0 0.0
    %282 = vmatpush1.msra.mxu0 0.0
    %283 = vmatprep.mubr.f32.mxu0 0.0
    %284 = vmatmul.mubr.f32.gmra.mrb[0].mxu0 %v201
    %v285 = vpop.f32.mrb[0].mxu0
    %v286 = vadd.f32 0.0, %v285
    %v287 = vpop.f32.mrb[0].mxu0
    %288 = vdwg.mxu0
    %vm289 = vcmask 58368
    %v290 = vsel %vm289, %v286, -inf
    %291 = vmax.xlane.f32.xlu0 %v290
    %v292 = vpop.xlane.xlu0 %291
    %v293 = vsub.f32 %v286, %v292
    %v294 = vmul.f32 %v293, 1.442695
    %v295 = vpow.pop %v294
    %v296 = vsel %vm289, %v295, 0.0
    %297 = vadd.xlane.f32.xlu0 %v296
    %v298 = vpop.xlane.xlu0 %297
    %v299 = vlog2.pop %v298
    %v300 = vmul.f32 %v299, 0.6931472
    %v301 = vsub.f32 %v293, %v300
    %302 = vst.msk [vmem:[#allocation5] sm:$0x3] %vm289, %v301
    // Predicated region
    $region14: #{actor_forward.1} parent=1 // pred_check
      _
    $region15: #{actor_forward.1} parent=1 // pred_check_branch
      %304 = sbr.rel (0) target = $region17
    $region16: #{actor_forward.1} parent=1 // pred_region
      %s306 = ssub.s32 32, 32
      %307 = vsyncadd [#allocation4], %s306
      %s309 = sshll.u32 [#allocation5], 4
      %s310 = int_to_ptr.vmem [resolvable:$true] %s309
      %312 = dma.vmem_to_hbm [thread:$0]  %s310, 32, %s2, [#allocation4]
    $region17: #{actor_forward.1} parent=1 // pred_fallthru
      _
    // Predicated region
    $region18: #{actor_forward.1} parent=1 // pred_check
      _
    $region19: #{actor_forward.1} parent=1 // pred_check_branch
      %314 = sbr.rel (0) target = $region21
    $region20: #{actor_forward.1} parent=1 // pred_region
      %315 = dma.done [#allocation4], 32
    $region21: #{actor_forward.1} parent=1 // pred_fallthru
      _
    %316 = vsyncpa [#allocation3], 1
    %317 = vsyncpa [#allocation4], 1

</llo_original>
